<compile_context>
chip_gen: v5e
topology: v5e:2x2
jax: 0.10.0
libtpu: 0.0.40
codegen_flags: <defaults>
</compile_context>

<pallas_src>
import math

import jax
import jax.numpy as jnp
from jax.experimental import pallas as pl
from jax.experimental.pallas import tpu as pltpu

_LANE_CANDIDATES = (512, 256, 128)   # lane-dense last dims tried for the zero-copy view
_TARGET_TILE_ELEMS = 512 * 1024      # ~2 MiB f32 per input tile (1 MiB bf16)
_NUM_CORES = 2                       # dual-TC sharding (v7x/v4/v5p); sequential no-op on v5e/v6e
_VMEM_LIMIT = 32 * 1024 * 1024       # covers the worst-case single-block remainder call on v5e
_LN2 = math.log(2.0)


def _sublane(dtype) -> int:
    """Sublane alignment for the second-to-last dim (8 f32, 16 bf16, 32 int8)."""
    return max(8, 32 // jnp.dtype(dtype).itemsize)


def _loss_sums_kernel(pred_ref, target_ref, out_ref, bce_acc, mse_acc):
    """Accumulates SUM(BCE-with-logits) and SUM((x - y)^2) over the visited blocks.

    Grid: (cores, blocks_per_core).  Axis 0 is "parallel" (one TensorCore per
    index), axis 1 is the sequential reduction.  out_ref is a per-core (1, 2)
    SMEM block: [0, 0] = BCE sum, [0, 1] = MSE sum.
    """
    k = pl.program_id(1)

    @pl.when(k == 0)
    def _init():
        bce_acc[...] = jnp.zeros_like(bce_acc)
        mse_acc[...] = jnp.zeros_like(mse_acc)

    x = pred_ref[...].astype(jnp.float32)    # logits
    y = target_ref[...].astype(jnp.float32)  # targets in [0, 1]
    tm, lane = x.shape

    # BCEWithLogitsLoss, numerically stable form (matches PyTorch):
    #   max(x, 0) - x*y + log(1 + exp(-|x|))
    # NOTE(v7x): exp + log are 2 EUP ops/element; audit the EUP slot in the
    # bundle dump if this kernel is pushed to the 3.2 TB/s per-TC roofline.
    bce_elem = jnp.maximum(x, 0.0) - x * y + jnp.log(1.0 + jnp.exp(-jnp.abs(x)))
    diff = x - y
    mse_elem = diff * diff

    # Fold the (tm, lane) tile into vreg-shaped (8, lane) partials with pure
    # VPU adds; the single XLU cross-lane reduction runs once per core below.
    bce_acc[...] += jnp.sum(bce_elem.reshape(tm // 8, 8, lane), axis=0)
    mse_acc[...] += jnp.sum(mse_elem.reshape(tm // 8, 8, lane), axis=0)

    @pl.when(k == pl.num_programs(1) - 1)
    def _finalize():
        out_ref[0, 0] = jnp.sum(bce_acc[...])
        out_ref[0, 1] = jnp.sum(mse_acc[...])


def _make_row_map(blocks_per_core):
    def row_map(c, k):
        return (c * blocks_per_core + k, 0)
    return row_map


def _loss_sums_call(pred2d, target2d, *, tile_rows, num_cores, blocks_per_core):
    """One pallas_call over the first num_cores*blocks_per_core*tile_rows rows of pred2d."""
    rows, lane = pred2d.shape
    assert num_cores * blocks_per_core * tile_rows <= rows
    row_map = _make_row_map(blocks_per_core)

    out = pl.pallas_call(
        _loss_sums_kernel,
        out_shape=jax.ShapeDtypeStruct((num_cores, 2), jnp.float32),
        grid_spec=pltpu.PrefetchScalarGridSpec(
            num_scalar_prefetch=0,
            grid=(num_cores, blocks_per_core),
            in_specs=[
                pl.BlockSpec((tile_rows, lane), row_map),
                pl.BlockSpec((tile_rows, lane), row_map),
            ],
            out_specs=pl.BlockSpec((1, 2), lambda c, k: (c, 0),
                                   memory_space=pltpu.MemorySpace.SMEM),
            scratch_shapes=[
                pltpu.VMEM((8, lane), jnp.float32),   # BCE vector accumulator
                pltpu.VMEM((8, lane), jnp.float32),   # MSE vector accumulator
            ],
        ),
        compiler_params=pltpu.CompilerParams(
            dimension_semantics=("parallel", "arbitrary"),
            vmem_limit_bytes=_VMEM_LIMIT,
        ),
    )(pred2d, target2d)
    return jnp.sum(out[:, 0]), jnp.sum(out[:, 1])


def _pallas_loss_sums(pred, target):
    """Fused SUM of elementwise BCE-with-logits and squared error over all elements."""
    if pred.shape != target.shape:
        raise ValueError("pred/target shape mismatch")
    n = int(pred.size)
    if n == 0:
        raise ValueError("empty input")

    flat_p = pred.reshape(-1)     # reshape of a contiguous array: zero-copy bitcast
    flat_t = target.reshape(-1)
    sub = _sublane(pred.dtype)

    lane = next((l for l in _LANE_CANDIDATES if n % l == 0), 0)
    bce_sum = jnp.float32(0.0)
    mse_sum = jnp.float32(0.0)
    rem_start = 0

    if lane and n // lane >= sub:
        # Bulk path: view the FULL input as a lane-dense (rows, lane) slab
        # (zero-copy) and let the grid visit only the tile-aligned prefix.
        rows = n // lane
        p2d = flat_p.reshape(rows, lane)
        t2d = flat_t.reshape(rows, lane)

        tile_cap = max(sub, (_TARGET_TILE_ELEMS // lane) // sub * sub)
        if rows <= 2 * tile_cap:
            tile_rows = (rows // sub) * sub          # one block grabs ~everything
            num_cores, nblk = 1, 1
        else:
            tile_rows = tile_cap
            nblk = rows // tile_rows
            num_cores = _NUM_CORES if nblk >= _NUM_CORES else 1
            nblk = (nblk // num_cores) * num_cores
        b, m = _loss_sums_call(p2d, t2d, tile_rows=tile_rows, num_cores=num_cores,
                               blocks_per_core=nblk // num_cores)
        bce_sum += b
        mse_sum += m
        rem_start = nblk * tile_rows * lane
    else:
        lane = _LANE_CANDIDATES[0]   # general fallback: everything goes through the padded path

    n_rem = n - rem_start
    if n_rem > 0:
        # Ragged remainder (< 2 tiles in the bulk path): zero-pad to an (8k, lane)
        # slab.  No per-element masking in the kernel: a padded (x=0, y=0) pair
        # contributes exactly ln(2) to the BCE sum and 0 to the MSE sum, so the
        # bias is removed analytically below (pad count is a static Python int).
        rows_rem = -(-n_rem // lane)
        rows_rem = max(sub, -(-rows_rem // sub) * sub)
        pad = rows_rem * lane - n_rem

        def to_slab(a):
            t = a[rem_start:]
            if pad:
                t = jnp.pad(t, (0, pad))
            return t.reshape(rows_rem, lane)

        b, m = _loss_sums_call(to_slab(flat_p), to_slab(flat_t),
                               tile_rows=rows_rem, num_cores=1, blocks_per_core=1)
        bce_sum += b - jnp.float32(pad * _LN2)
        mse_sum += m

    return bce_sum, mse_sum


class CombinedLossPallas:
    """JAX/Pallas equivalent of CombinedLoss({'bce': BCEWithLogitsLoss, 'mse': MSELoss})."""

    def __init__(self, weights=None):
        self.loss_names = ("bce", "mse")
        self.weights = dict(weights) if weights is not None else {"bce": 1.0, "mse": 0.5}

    def __call__(self, pred, target):
        n = int(pred.size)
        bce_sum, mse_sum = _pallas_loss_sums(pred, target)
        inv_n = jnp.float32(1.0 / n)
        loss_values = {"bce": bce_sum * inv_n, "mse": mse_sum * inv_n}

        # Scalar weighting / accumulation mirrors the PyTorch forward loop.
        total_loss = jnp.float32(0.0)
        loss_dict = {}
        for name in self.loss_names:
            loss_value = loss_values[name]
            weighted_loss = self.weights.get(name, 1.0) * loss_value
            loss_dict[name] = loss_value
            loss_dict[f"weighted_{name}"] = weighted_loss
            total_loss = total_loss + weighted_loss
        loss_dict["total"] = total_loss
        return loss_dict


def _reference(pred, target, weights):
    bce = jnp.mean(jnp.maximum(pred, 0.0) - pred * target
                   + jnp.log1p(jnp.exp(-jnp.abs(pred))))
    mse = jnp.mean((pred - target) ** 2)
    return bce, mse, weights["bce"] * bce + weights["mse"] * mse


if __name__ == "__main__":
    key = jax.random.PRNGKey(0)
    loss_fn = CombinedLossPallas()

    shapes = [
        (2, 4, 16, 16),     # small demo shape: single padded block + ln(2) correction
        (4, 8, 256, 288),   # zero-copy bulk, (parallel, arbitrary) grid (2, 2) + no-pad remainder
        (3, 5, 7, 11),      # ragged element count: general fallback path
    ]
    for shape in shapes:
        key, kp, kt = jax.random.split(key, 3)
        pred = jax.random.normal(kp, shape, dtype=jnp.float32)              # logits
        target = jax.random.bernoulli(kt, 0.1, shape).astype(jnp.float32)   # {0,1} masks

        out = loss_fn(pred, target)
        out = jax.tree_util.tree_map(jax.block_until_ready, out)

        ref_bce, ref_mse, ref_total = _reference(pred, target, loss_fn.weights)
        assert jnp.allclose(out["bce"], ref_bce, rtol=1e-4, atol=1e-5), (shape, out["bce"], ref_bce)
        assert jnp.allclose(out["mse"], ref_mse, rtol=1e-4, atol=1e-5), (shape, out["mse"], ref_mse)
        assert jnp.allclose(out["weighted_bce"], 1.0 * ref_bce, rtol=1e-4, atol=1e-5)
        assert jnp.allclose(out["weighted_mse"], 0.5 * ref_mse, rtol=1e-4, atol=1e-5)
        assert jnp.allclose(out["total"], ref_total, rtol=1e-4, atol=1e-5)

    print("KERNEL_OK")
</pallas_src>

<mosaic_0001>
module attributes {stable_mosaic.version = 11 : i64} {
  func.func @_loss_sums_kernel(%arg0: i32, %arg1: i32, %arg2: memref<8x512xf32, #tpu.memory_space<vmem>>, %arg3: memref<8x512xf32, #tpu.memory_space<vmem>>, %arg4: memref<1x2xf32, #tpu.memory_space<smem>>, %arg5: memref<8x512xf32, #tpu.memory_space<vmem>>, %arg6: memref<8x512xf32, #tpu.memory_space<vmem>>) attributes {dimension_semantics = [#tpu.dimension_semantics<parallel>, #tpu.dimension_semantics<arbitrary>], iteration_bounds = array<i64: 1, 1>, scalar_prefetch = 0 : i64, scratch_operands = 2 : i64, tpu.core_type = #tpu.core_type<tc>, window_params = [{transform_indices = @transform_0, window_bounds = array<i64: 8, 512>}, {transform_indices = @transform_1, window_bounds = array<i64: 8, 512>}, {transform_indices = @transform_2, window_bounds = array<i64: 1, 2>}]} {
    %c0_i32 = arith.constant 0 : i32
    %0 = arith.cmpi eq, %arg1, %c0_i32 : i32
    %1 = arith.extui %0 : i1 to i32
    %c0_i32_0 = arith.constant 0 : i32
    %2 = arith.cmpi ne, %1, %c0_i32_0 : i32
    scf.if %2 {
      %cst_18 = arith.constant 0.000000e+00 : f32
      %32 = vector.broadcast %cst_18 : f32 to vector<8x512xf32>
      %c0_19 = arith.constant 0 : index
      %c0_20 = arith.constant 0 : index
      %33 = vector.load %arg5[%c0_19, %c0_20] : memref<8x512xf32, #tpu.memory_space<vmem>>, vector<8x512xf32>
      tpu.vector_store %arg5[%c0_19, %c0_20], %32 {strides = array<i32>} : memref<8x512xf32, #tpu.memory_space<vmem>>, vector<8x512xf32>,
      %cst_21 = arith.constant 0.000000e+00 : f32
      %34 = vector.broadcast %cst_21 : f32 to vector<8x512xf32>
      %c0_22 = arith.constant 0 : index
      %c0_23 = arith.constant 0 : index
      %35 = vector.load %arg6[%c0_22, %c0_23] : memref<8x512xf32, #tpu.memory_space<vmem>>, vector<8x512xf32>
      tpu.vector_store %arg6[%c0_22, %c0_23], %34 {strides = array<i32>} : memref<8x512xf32, #tpu.memory_space<vmem>>, vector<8x512xf32>,
    } else {
    }
    %c0 = arith.constant 0 : index
    %c0_1 = arith.constant 0 : index
    %3 = vector.load %arg2[%c0, %c0_1] : memref<8x512xf32, #tpu.memory_space<vmem>>, vector<8x512xf32>
    %c0_2 = arith.constant 0 : index
    %c0_3 = arith.constant 0 : index
    %4 = vector.load %arg3[%c0_2, %c0_3] : memref<8x512xf32, #tpu.memory_space<vmem>>, vector<8x512xf32>
    %cst = arith.constant 0.000000e+00 : f32
    %5 = vector.broadcast %cst : f32 to vector<8x512xf32>
    %6 = arith.maximumf %3, %5 : vector<8x512xf32>
    %7 = arith.mulf %3, %4 : vector<8x512xf32>
    %8 = arith.subf %6, %7 : vector<8x512xf32>
    %9 = math.absf %3 : vector<8x512xf32>
    %cst_4 = arith.constant 0.000000e+00 : f32
    %10 = vector.broadcast %cst_4 : f32 to vector<8x512xf32>
    %11 = arith.subf %10, %9 : vector<8x512xf32>
    %12 = math.exp %11 : vector<8x512xf32>
    %cst_5 = arith.constant 1.000000e+00 : f32
    %13 = vector.broadcast %cst_5 : f32 to vector<8x512xf32>
    %14 = arith.addf %13, %12 : vector<8x512xf32>
    %15 = math.log %14 : vector<8x512xf32>
    %16 = arith.addf %8, %15 : vector<8x512xf32>
    %17 = arith.subf %3, %4 : vector<8x512xf32>
    %18 = arith.mulf %17, %17 : vector<8x512xf32>
    %c0_6 = arith.constant 0 : index
    %c0_7 = arith.constant 0 : index
    %19 = vector.load %arg5[%c0_6, %c0_7] : memref<8x512xf32, #tpu.memory_space<vmem>>, vector<8x512xf32>
    %20 = vector.shape_cast %16 : vector<8x512xf32> to vector<1x8x512xf32>
    %cst_8 = arith.constant dense<0.000000e+00> : vector<8x512xf32>
    %21 = vector.multi_reduction <add>, %20, %cst_8 [0] : vector<1x8x512xf32> to vector<8x512xf32>
    %22 = arith.addf %19, %21 : vector<8x512xf32>
    %c0_9 = arith.constant 0 : index
    %c0_10 = arith.constant 0 : index
    %23 = vector.load %arg5[%c0_9, %c0_10] : memref<8x512xf32, #tpu.memory_space<vmem>>, vector<8x512xf32>
    tpu.vector_store %arg5[%c0_9, %c0_10], %22 {strides = array<i32>} : memref<8x512xf32, #tpu.memory_space<vmem>>, vector<8x512xf32>,
    %c0_11 = arith.constant 0 : index
    %c0_12 = arith.constant 0 : index
    %24 = vector.load %arg6[%c0_11, %c0_12] : memref<8x512xf32, #tpu.memory_space<vmem>>, vector<8x512xf32>
    %25 = vector.shape_cast %18 : vector<8x512xf32> to vector<1x8x512xf32>
    %cst_13 = arith.constant dense<0.000000e+00> : vector<8x512xf32>
    %26 = vector.multi_reduction <add>, %25, %cst_13 [0] : vector<1x8x512xf32> to vector<8x512xf32>
    %27 = arith.addf %24, %26 : vector<8x512xf32>
    %c0_14 = arith.constant 0 : index
    %c0_15 = arith.constant 0 : index
    %28 = vector.load %arg6[%c0_14, %c0_15] : memref<8x512xf32, #tpu.memory_space<vmem>>, vector<8x512xf32>
    tpu.vector_store %arg6[%c0_14, %c0_15], %27 {strides = array<i32>} : memref<8x512xf32, #tpu.memory_space<vmem>>, vector<8x512xf32>,
    %c0_i32_16 = arith.constant 0 : i32
    %29 = arith.cmpi eq, %arg1, %c0_i32_16 : i32
    %30 = arith.extui %29 : i1 to i32
    %c0_i32_17 = arith.constant 0 : i32
    %31 = arith.cmpi ne, %30, %c0_i32_17 : i32
    scf.if %31 {
      %c0_18 = arith.constant 0 : index
      %c0_19 = arith.constant 0 : index
      %32 = vector.load %arg5[%c0_18, %c0_19] : memref<8x512xf32, #tpu.memory_space<vmem>>, vector<8x512xf32>
      %33 = vector.shape_cast %32 : vector<8x512xf32> to vector<1x8x512xf32>
      %cst_20 = arith.constant dense<0.000000e+00> : vector<1xf32>
      %34 = vector.multi_reduction <add>, %33, %cst_20 [1, 2] : vector<1x8x512xf32> to vector<1xf32>
      %35 = vector.shape_cast %34 : vector<1xf32> to vector<1x1x1xf32>
      %36 = vector.extract %35[0, 0, 0] : f32 from vector<1x1x1xf32>
      %c0_21 = arith.constant 0 : index
      %c0_22 = arith.constant 0 : index
      %37 = memref.load %arg4[%c0_21, %c0_22] : memref<1x2xf32, #tpu.memory_space<smem>>
      memref.store %36, %arg4[%c0_21, %c0_22] : memref<1x2xf32, #tpu.memory_space<smem>>
      %c0_23 = arith.constant 0 : index
      %c0_24 = arith.constant 0 : index
      %38 = vector.load %arg6[%c0_23, %c0_24] : memref<8x512xf32, #tpu.memory_space<vmem>>, vector<8x512xf32>
      %39 = vector.shape_cast %38 : vector<8x512xf32> to vector<1x8x512xf32>
      %cst_25 = arith.constant dense<0.000000e+00> : vector<1xf32>
      %40 = vector.multi_reduction <add>, %39, %cst_25 [1, 2] : vector<1x8x512xf32> to vector<1xf32>
      %41 = vector.shape_cast %40 : vector<1xf32> to vector<1x1x1xf32>
      %42 = vector.extract %41[0, 0, 0] : f32 from vector<1x1x1xf32>
      %c0_26 = arith.constant 0 : index
      %c1 = arith.constant 1 : index
      %43 = memref.load %arg4[%c0_26, %c1] : memref<1x2xf32, #tpu.memory_space<smem>>
      memref.store %42, %arg4[%c0_26, %c1] : memref<1x2xf32, #tpu.memory_space<smem>>
    } else {
    }
    return
  }
  func.func @transform_0(%arg0: i32, %arg1: i32) -> (i32, i32) {
    %c1_i32 = arith.constant 1 : i32
    %0 = arith.muli %arg0, %c1_i32 : i32
    %1 = arith.addi %0, %arg1 : i32
    %c0_i32 = arith.constant 0 : i32
    %c0_i32_0 = arith.constant 0 : i32
    return %1, %c0_i32 : i32, i32
  }
  func.func @transform_1(%arg0: i32, %arg1: i32) -> (i32, i32) {
    %c1_i32 = arith.constant 1 : i32
    %0 = arith.muli %arg0, %c1_i32 : i32
    %1 = arith.addi %0, %arg1 : i32
    %c0_i32 = arith.constant 0 : i32
    %c0_i32_0 = arith.constant 0 : i32
    return %1, %c0_i32 : i32, i32
  }
  func.func @transform_2(%arg0: i32, %arg1: i32) -> (i32, i32) {
    %c0_i32 = arith.constant 0 : i32
    %c0_i32_0 = arith.constant 0 : i32
    return %arg0, %c0_i32 : i32, i32
  }
}

</mosaic_0001>

<llo_original>
// kernel: tpu_custom_call.1
$region0: #{tpu_custom_call.1}
  #allocation0 [shape = 'u32[]', space=smem, size = 0x4, offset = 0x4, fixed_abs, tag = 'smem constant byte address 0x4 - core index']
  #allocation1 [shape = 'u32[72,128]{1,0:T(1,128)}', space=vmem, size = 0x9000, scoped, tag = 'internal scratch']
  #allocation2 [shape = 'f32[8,512]{1,0:T(8,128)}', space=vmem, size = 0x4000, scoped, tag = 'scratch operand']
  #allocation3 [shape = 'f32[8,512]{1,0:T(8,128)}', space=vmem, size = 0x4000, scoped, tag = 'scratch operand']
  %s0 = inlined_call_operand.hbm [shape: f32[8,512], index: 0, kind: input, shape index: {}]
  %s1 = inlined_call_operand.hbm [shape: f32[8,512], index: 1, kind: input, shape index: {}]
  %s2 = inlined_call_operand.hbm [shape: f32[1,2], index: 2, kind: output, shape index: {}]
  %s3 = sld [smem:[#allocation0]]
  $region34: #{tpu_custom_call.1} parent=0
    _
  %s5 = ssub.s32 1, %s3
  %s6 = scalar_select 0, %s5, %s3
  $region1: #{tpu_custom_call.1} parent=0
    #allocation4 [shape = 'u8[16384]{0}', space=vmem, size = 0x4000, scoped, tag = 'input window, operand 0, single buffered']
    #allocation5 [shape = 's32[1]{0}', space=sflag, size = 0x4, scoped, tag = 'scoped memory for tpu_custom_call.1']
    #allocation6 [shape = 's32[1]{0}', space=sflag, size = 0x4, scoped, tag = 'scoped memory for tpu_custom_call.1']
    #allocation7 [shape = 'u8[16384]{0}', space=vmem, size = 0x4000, scoped, tag = 'input window, operand 1, single buffered']
    #allocation8 [shape = 's32[1]{0}', space=sflag, size = 0x4, scoped, tag = 'scoped memory for tpu_custom_call.1']
    #allocation9 [shape = 'u8[512]{0}', space=smem, size = 0x200, scoped, tag = 'output window, operand 0, single buffered']
    %7 = vsyncpa [#allocation5], 0
    %8 = vsyncpa [#allocation8], 0
    %9 = vsyncpa [#allocation6], 0
    // Predicated region
    $region2: #{tpu_custom_call.1} parent=1 // pred_check
      _
    $region3: #{tpu_custom_call.1} parent=1 // pred_check_branch
      %11 = sbr.rel (0) target = $region5
    $region4: #{tpu_custom_call.1} parent=1 // pred_region
      %s12 = sadd.s32 0, 0
      %14 = vsyncadd [#allocation5], 0
      %s15 = smul.addr %s12, 4
      %s16 = smul.addr %s15, 8
      %s17 = scalar_lea.hbm %s0, %s16
      %s19 = sshll.u32 %s17, 4
      %s20 = int_to_ptr.hbm [resolvable:$true] %s19
      %s21 = sshll.u32 [#allocation4], 4
      %s22 = int_to_ptr.vmem [resolvable:$true] %s21
      %24 = dma.hbm_to_vmem [thread:$0]  %s20, 512, %s22, [#allocation5]
    $region5: #{tpu_custom_call.1} parent=1 // pred_fallthru
      _
    // Predicated region
    $region6: #{tpu_custom_call.1} parent=1 // pred_check
      _
    $region7: #{tpu_custom_call.1} parent=1 // pred_check_branch
      %26 = sbr.rel (0) target = $region9
    $region8: #{tpu_custom_call.1} parent=1 // pred_region
      %s27 = sadd.s32 0, 0
      %29 = vsyncadd [#allocation8], 0
      %s30 = smul.addr %s27, 4
      %s31 = smul.addr %s30, 8
      %s32 = scalar_lea.hbm %s1, %s31
      %s34 = sshll.u32 %s32, 4
      %s35 = int_to_ptr.hbm [resolvable:$true] %s34
      %s36 = sshll.u32 [#allocation7], 4
      %s37 = int_to_ptr.vmem [resolvable:$true] %s36
      %39 = dma.hbm_to_vmem [thread:$0]  %s35, 512, %s37, [#allocation8]
    $region9: #{tpu_custom_call.1} parent=1 // pred_fallthru
      _
    // Predicated region
    $region10: #{tpu_custom_call.1} parent=1 // pred_check
      _
    $region11: #{tpu_custom_call.1} parent=1 // pred_check_branch
      %41 = sbr.rel (0) target = $region13
    $region12: #{tpu_custom_call.1} parent=1 // pred_region
      %43 = dma.done [#allocation5], 512
    $region13: #{tpu_custom_call.1} parent=1 // pred_fallthru
      _
    // Predicated region
    $region14: #{tpu_custom_call.1} parent=1 // pred_check
      _
    $region15: #{tpu_custom_call.1} parent=1 // pred_check_branch
      %45 = sbr.rel (0) target = $region17
    $region16: #{tpu_custom_call.1} parent=1 // pred_region
      %47 = dma.done [#allocation8], 512
    $region17: #{tpu_custom_call.1} parent=1 // pred_fallthru
      _
    %s48 = sadd.s32 0, 0
    %s49 = sadd.s32 0, 0
    %p50 = scmp.eq.s32.totalorder 0, 0
    // Predicated region
    $region18: #{tpu_custom_call.1} parent=1 // pred_check
      %p51 = pneg %p50
    $region19: #{tpu_custom_call.1} parent=1 // pred_check_branch
      %53 = sbr.rel (%p51) target = $region21
    $region20: #{tpu_custom_call.1} parent=1 // pred_region
      %54 = vst [vmem:[#allocation2] sm:$0xff] 0.0
      %55 = vst [vmem:[#allocation2 + $0x8] sm:$0xff] 0.0
      %56 = vst [vmem:[#allocation2 + $0x10] sm:$0xff] 0.0
      %57 = vst [vmem:[#allocation2 + $0x18] sm:$0xff] 0.0
      %58 = vst [vmem:[#allocation3] sm:$0xff] 0.0
      %59 = vst [vmem:[#allocation3 + $0x8] sm:$0xff] 0.0
      %60 = vst [vmem:[#allocation3 + $0x10] sm:$0xff] 0.0
      %61 = vst [vmem:[#allocation3 + $0x18] sm:$0xff] 0.0
    $region21: #{tpu_custom_call.1} parent=1 // pred_fallthru
      _
    %v62 = vld [vmem:[#allocation4] sm:$0xff]
    %v63 = vld [vmem:[#allocation4 + $0x8] sm:$0xff]
    %v64 = vld [vmem:[#allocation4 + $0x10] sm:$0xff]
    %v65 = vld [vmem:[#allocation4 + $0x18] sm:$0xff]
    %v66 = vld [vmem:[#allocation7] sm:$0xff]
    %v67 = vld [vmem:[#allocation7 + $0x8] sm:$0xff]
    %v68 = vld [vmem:[#allocation7 + $0x10] sm:$0xff]
    %v69 = vld [vmem:[#allocation7 + $0x18] sm:$0xff]
    %v70 = vmax.f32 %v62, 0.0
    %v71 = vmax.f32 %v63, 0.0
    %v72 = vmax.f32 %v64, 0.0
    %v73 = vmax.f32 %v65, 0.0
    %v74 = vmul.f32 %v62, %v66
    %v75 = vmul.f32 %v63, %v67
    %v76 = vmul.f32 %v64, %v68
    %v77 = vmul.f32 %v65, %v69
    %v78 = vsub.f32 %v70, %v74
    %v79 = vsub.f32 %v71, %v75
    %v80 = vsub.f32 %v72, %v76
    %v81 = vsub.f32 %v73, %v77
    %v82 = vand.u32 2147483647, %v62
    %v83 = vand.u32 2147483647, %v63
    %v84 = vand.u32 2147483647, %v64
    %v85 = vand.u32 2147483647, %v65
    %v86 = vsub.f32 0.0, %v82
    %v87 = vsub.f32 0.0, %v83
    %v88 = vsub.f32 0.0, %v84
    %v89 = vsub.f32 0.0, %v85
    %v90 = vmul.f32 %v86, 1.442695
    %v91 = vpow.pop %v90
    %v92 = vmul.f32 %v87, 1.442695
    %v93 = vpow.pop %v92
    %v94 = vmul.f32 %v88, 1.442695
    %v95 = vpow.pop %v94
    %v96 = vmul.f32 %v89, 1.442695
    %v97 = vpow.pop %v96
    %v98 = vadd.f32 %v91, 1.0
    %v99 = vadd.f32 %v93, 1.0
    %v100 = vadd.f32 %v95, 1.0
    %v101 = vadd.f32 %v97, 1.0
    %v102 = vlog2.pop %v98
    %v103 = vmul.f32 %v102, 0.6931472
    %v104 = vlog2.pop %v99
    %v105 = vmul.f32 %v104, 0.6931472
    %v106 = vlog2.pop %v100
    %v107 = vmul.f32 %v106, 0.6931472
    %v108 = vlog2.pop %v101
    %v109 = vmul.f32 %v108, 0.6931472
    %v110 = vadd.f32 %v78, %v103
    %v111 = vadd.f32 %v79, %v105
    %v112 = vadd.f32 %v80, %v107
    %v113 = vadd.f32 %v81, %v109
    %v114 = vsub.f32 %v62, %v66
    %v115 = vsub.f32 %v63, %v67
    %v116 = vsub.f32 %v64, %v68
    %v117 = vsub.f32 %v65, %v69
    %v118 = vmul.f32 %v114, %v114
    %v119 = vmul.f32 %v115, %v115
    %v120 = vmul.f32 %v116, %v116
    %v121 = vmul.f32 %v117, %v117
    %v122 = vld [vmem:[#allocation2] sm:$0xff]
    %v123 = vld [vmem:[#allocation2 + $0x8] sm:$0xff]
    %v124 = vld [vmem:[#allocation2 + $0x10] sm:$0xff]
    %v125 = vld [vmem:[#allocation2 + $0x18] sm:$0xff]
    %v126 = vadd.f32 %v110, 0.0
    %v127 = vadd.f32 %v111, 0.0
    %v128 = vadd.f32 %v112, 0.0
    %v129 = vadd.f32 %v113, 0.0
    %v130 = vadd.f32 %v122, %v126
    %v131 = vadd.f32 %v123, %v127
    %v132 = vadd.f32 %v124, %v128
    %v133 = vadd.f32 %v125, %v129
    %134 = vst [vmem:[#allocation2] sm:$0xff] %v130
    %135 = vst [vmem:[#allocation2 + $0x8] sm:$0xff] %v131
    %136 = vst [vmem:[#allocation2 + $0x10] sm:$0xff] %v132
    %137 = vst [vmem:[#allocation2 + $0x18] sm:$0xff] %v133
    %v138 = vld [vmem:[#allocation3] sm:$0xff]
    %v139 = vld [vmem:[#allocation3 + $0x8] sm:$0xff]
    %v140 = vld [vmem:[#allocation3 + $0x10] sm:$0xff]
    %v141 = vld [vmem:[#allocation3 + $0x18] sm:$0xff]
    %v142 = vadd.f32 %v118, 0.0
    %v143 = vadd.f32 %v119, 0.0
    %v144 = vadd.f32 %v120, 0.0
    %v145 = vadd.f32 %v121, 0.0
    %v146 = vadd.f32 %v138, %v142
    %v147 = vadd.f32 %v139, %v143
    %v148 = vadd.f32 %v140, %v144
    %v149 = vadd.f32 %v141, %v145
    %150 = vst [vmem:[#allocation3] sm:$0xff] %v146
    %151 = vst [vmem:[#allocation3 + $0x8] sm:$0xff] %v147
    %152 = vst [vmem:[#allocation3 + $0x10] sm:$0xff] %v148
    %153 = vst [vmem:[#allocation3 + $0x18] sm:$0xff] %v149
    // Predicated region
    $region22: #{tpu_custom_call.1} parent=1 // pred_check
      %p154 = pneg %p50
    $region23: #{tpu_custom_call.1} parent=1 // pred_check_branch
      %156 = sbr.rel (%p154) target = $region25
    $region24: #{tpu_custom_call.1} parent=1 // pred_region
      %v157 = vld [vmem:[#allocation2] sm:$0xff]
      %v158 = vld [vmem:[#allocation2 + $0x8] sm:$0xff]
      %v159 = vld [vmem:[#allocation2 + $0x10] sm:$0xff]
      %v160 = vld [vmem:[#allocation2 + $0x18] sm:$0xff]
      %v161 = vadd.f32 %v157, %v158
      %v162 = vadd.f32 %v161, %v159
      %v163 = vadd.f32 %v162, %v160
      %164 = vadd.xlane.f32.xlu0 %v163
      %v165 = vpop.xlane.xlu0 %164
      %v166 = vrot.slane %v165, 4
      %v167 = vadd.f32 %v165, %v166
      %v168 = vrot.slane %v167, 2
      %v169 = vadd.f32 %v167, %v168
      %v170 = vrot.slane %v169, 1
      %v171 = vadd.f32 %v169, %v170
      %s172 = vtos %v171
      %s173 = scalar_lea.smem [#allocation9], 0
      %174 = sst [smem:[%s173]] %s172
      %v175 = vld [vmem:[#allocation3] sm:$0xff]
      %v176 = vld [vmem:[#allocation3 + $0x8] sm:$0xff]
      %v177 = vld [vmem:[#allocation3 + $0x10] sm:$0xff]
      %v178 = vld [vmem:[#allocation3 + $0x18] sm:$0xff]
      %v179 = vadd.f32 %v175, %v176
      %v180 = vadd.f32 %v179, %v177
      %v181 = vadd.f32 %v180, %v178
      %182 = vadd.xlane.f32.xlu0 %v181
      %v183 = vpop.xlane.xlu0 %182
      %v184 = vrot.slane %v183, 4
      %v185 = vadd.f32 %v183, %v184
      %v186 = vrot.slane %v185, 2
      %v187 = vadd.f32 %v185, %v186
      %v188 = vrot.slane %v187, 1
      %v189 = vadd.f32 %v187, %v188
      %s190 = vtos %v189
      %s191 = scalar_lea.smem [#allocation9], 1
      %192 = sst [smem:[%s191]] %s190
    $region25: #{tpu_custom_call.1} parent=1 // pred_fallthru
      _
    // Predicated region
    $region26: #{tpu_custom_call.1} parent=1 // pred_check
      _
    $region27: #{tpu_custom_call.1} parent=1 // pred_check_branch
      %194 = sbr.rel (0) target = $region29
    $region28: #{tpu_custom_call.1} parent=1 // pred_region
      %196 = vsyncadd [#allocation6], 0
      %s198 = sshll.u32 %s2, 4
      %s199 = int_to_ptr.hbm [resolvable:$true] %s198
      %201 = dma.smem_to_hbm [#allocation9], 16, %s199, [#allocation6]
    $region29: #{tpu_custom_call.1} parent=1 // pred_fallthru
      _
    // Predicated region
    $region30: #{tpu_custom_call.1} parent=1 // pred_check
      _
    $region31: #{tpu_custom_call.1} parent=1 // pred_check_branch
      %203 = sbr.rel (0) target = $region33
    $region32: #{tpu_custom_call.1} parent=1 // pred_region
      %205 = dma.done [#allocation6], 16
    $region33: #{tpu_custom_call.1} parent=1 // pred_fallthru
      _
    %206 = sfence
    %207 = vsyncpa [#allocation5], 1
    %208 = vsyncpa [#allocation8], 1
    %209 = vsyncpa [#allocation6], 1

</llo_original>
